<compile_context>
chip_gen: v7x
topology: tpu7x:2x2x1
jax: 0.10.0
libtpu: 0.0.40
codegen_flags: <defaults>
</compile_context>

<pallas_src>
import functools

import jax
import jax.numpy as jnp
from jax.experimental import pallas as pl
from jax.experimental.pallas import tpu as pltpu


def _round_up(x, m):
    return ((x + m - 1) // m) * m


def _autoencoder_kernel(x_ref, w_ref, b_ref, out_ref):
    """x_ref: (TILE_B, K_in) bf16; w_ref: (5, P, P) bf16; b_ref: (8, P) f32.

    out_ref: (TILE_B, P) f32 lane-dense slab holding BOTH outputs:
      decoded in lanes [0:n_input], encoded in lanes [n_input:n_input+n_bott]
    (the lane shift is baked into the packed weights, so the kernel just adds).
    """
    k_in = x_ref.shape[-1]

    def dense(h_bf16, layer, relu, k=None):
        w = w_ref[layer] if k is None else w_ref[layer, :k, :]
        acc = jnp.dot(h_bf16, w,
                      preferred_element_type=jnp.float32) + b_ref[layer:layer + 1, :]
        if relu:
            acc = jnp.maximum(acc, 0.0)
        return acc

    x = x_ref[...]                                            # (TILE_B, K_in) bf16

    # ---- Encoder ----
    h = dense(x, 0, relu=True, k=k_in).astype(jnp.bfloat16)   # fc1_hidden + relu
    h = dense(h, 1, relu=True).astype(jnp.bfloat16)           # fc2_hidden + relu
    enc = dense(h, 2, relu=False)                             # fc2_botlneck (f32)
                                                              #   -> lanes [n_in:n_in+n_bott]

    # ---- Decoder ----
    # TODO(synk): nn.Dropout(p=0.2) is training-only; identity at inference.
    h = dense(enc.astype(jnp.bfloat16), 3, relu=True).astype(jnp.bfloat16)  # fc1 + relu
    dec = dense(h, 4, relu=False)                             # fc2 (f32) -> lanes [0:n_in]

    # Nonzero lane regions of enc and dec are disjoint and padding is exact
    # zeros, so a single add packs both outputs exactly.
    out_ref[...] = (dec + enc).astype(out_ref.dtype)


def _pack_params(params, n_input, P):
    """Zero-pad every layer to (P, P) / (P,) and stack into two buffers.

    The bottleneck layer's output columns (and the decoder fc1's input rows)
    are shifted by n_input so `encoded` occupies lanes [n_input:n_input+n_bott]
    of the activation — enabling the single packed output slab.
    """
    names = ["enc_fc1", "enc_fc2", "enc_bott", "dec_fc1", "dec_fc2"]
    col_off = {"enc_bott": n_input}
    row_off = {"dec_fc1": n_input}
    w_stack = jnp.zeros((5, P, P), jnp.float32)
    b_stack = jnp.zeros((8, P), jnp.float32)      # 8 rows for sublane alignment
    for i, name in enumerate(names):
        W, b = params[name]
        fin, fout = W.shape
        r = row_off.get(name, 0)
        c = col_off.get(name, 0)
        w_stack = w_stack.at[i, r:r + fin, c:c + fout].set(W)
        b_stack = b_stack.at[i, c:c + fout].set(b.reshape(-1))
    return w_stack.astype(jnp.bfloat16), b_stack


@functools.partial(jax.jit,
                   static_argnames=("n_input", "n_bottleneck", "P", "tile_b"))
def _forward(x, w_stack, b_stack, *, n_input, n_bottleneck, P, tile_b):
    """Single fused executable: pad/cast x -> pallas_call -> slice outputs."""
    B = x.shape[0]
    K_in = _round_up(n_input, 8)

    # Tile sizing: aim for >=4 grid steps (pipeline depth; >=2 per TC on v7x)
    # while allowing big mem-bound-friendly tiles (cap = tile_b) for large B.
    tb = max(8, min(tile_b, _round_up(pl.cdiv(B, 4), 8)))
    B_pad = _round_up(B, tb)
    grid = (B_pad // tb,)

    x_pad = jnp.zeros((B_pad, K_in), jnp.bfloat16).at[:B, :n_input].set(
        x.astype(jnp.bfloat16))

    packed = pl.pallas_call(
        _autoencoder_kernel,
        grid=grid,
        in_specs=[
            pl.BlockSpec((tb, K_in), lambda i: (i, 0)),       # x tile (pipelined)
            pl.BlockSpec((5, P, P), lambda i: (0, 0, 0)),     # weights: VMEM-resident
            pl.BlockSpec((8, P), lambda i: (0, 0)),           # biases:  VMEM-resident
        ],
        out_specs=pl.BlockSpec((tb, P), lambda i: (i, 0)),    # packed output slab
        out_shape=jax.ShapeDtypeStruct((B_pad, P), jnp.float32),
        compiler_params=pltpu.CompilerParams(
            dimension_semantics=("parallel",),                # v7x: shard grid over 2 TCs
        ),
    )(x_pad, w_stack, b_stack)

    encoded = packed[:B, n_input:n_input + n_bottleneck]
    decoded = packed[:B, :n_input]
    return encoded, decoded


def model_autoencoder_forward(x, params, tile_b=1024):
    """x: (B, input_size) float32. params: dict of (W(in,out), b(1,out)) per layer.

    Returns (encoded, decoded) float32, matching the PyTorch module.
    """
    B, n_input = x.shape
    n_hidden = params["enc_fc1"][0].shape[1]
    n_bottleneck = params["enc_bott"][0].shape[1]

    # Common padded feature width: every layer's in/out dim fits, AND the
    # packed output layout (decoded | encoded) fits in one P-lane slab.
    P = _round_up(max(n_input, n_hidden, n_bottleneck, n_input + n_bottleneck), 128)

    w_stack, b_stack = _pack_params(params, n_input, P)
    return _forward(x, w_stack, b_stack,
                    n_input=n_input, n_bottleneck=n_bottleneck, P=P, tile_b=tile_b)


# --------------------------------------------------------------------------
# Test harness
# --------------------------------------------------------------------------
def _init_linear(key, fan_in, fan_out):
    """Mimic torch.nn.Linear default init (uniform +-1/sqrt(fan_in))."""
    kw, kb = jax.random.split(key)
    bound = 1.0 / jnp.sqrt(jnp.float32(fan_in))
    W = jax.random.uniform(kw, (fan_in, fan_out), jnp.float32, -bound, bound)
    b = jax.random.uniform(kb, (1, fan_out), jnp.float32, -bound, bound)
    return W, b


def _reference_forward_f32(x, params):
    w1, b1 = params["enc_fc1"]
    w2, b2 = params["enc_fc2"]
    w3, b3 = params["enc_bott"]
    w4, b4 = params["dec_fc1"]
    w5, b5 = params["dec_fc2"]
    h = jnp.maximum(x @ w1 + b1, 0.0)
    h = jnp.maximum(h @ w2 + b2, 0.0)
    enc = h @ w3 + b3
    d = jnp.maximum(enc @ w4 + b4, 0.0)
    dec = d @ w5 + b5
    return enc, dec


def _reference_forward_bf16(x, params):
    """Pure-JAX reference with the kernel's precision model: bf16 weights and
    inter-layer activations, f32 accumulation and f32 biases."""
    def dense(h_bf16, name, relu):
        W, b = params[name]
        acc = jnp.dot(h_bf16, W.astype(jnp.bfloat16),
                      preferred_element_type=jnp.float32) + b
        return jnp.maximum(acc, 0.0) if relu else acc

    h = dense(x.astype(jnp.bfloat16), "enc_fc1", True).astype(jnp.bfloat16)
    h = dense(h, "enc_fc2", True).astype(jnp.bfloat16)
    enc = dense(h, "enc_bott", False)
    h = dense(enc.astype(jnp.bfloat16), "dec_fc1", True).astype(jnp.bfloat16)
    dec = dense(h, "dec_fc2", False)
    return enc, dec


if __name__ == "__main__":
    # Small shapes consistent with the module's forward; batch sized so the
    # tile chooser yields a 4-step grid (pipeline / parallel axis exercised).
    batch = 512
    input_size = 32
    n_hidden = 64
    bottleneck_size = 16

    root = jax.random.PRNGKey(0)
    kx, k1, k2, k3, k4, k5 = jax.random.split(root, 6)

    x = jax.random.normal(kx, (batch, input_size), jnp.float32)
    params = {
        "enc_fc1": _init_linear(k1, input_size, n_hidden),
        "enc_fc2": _init_linear(k2, n_hidden, n_hidden),
        "enc_bott": _init_linear(k3, n_hidden, bottleneck_size),
        "dec_fc1": _init_linear(k4, bottleneck_size, n_hidden),
        "dec_fc2": _init_linear(k5, n_hidden, input_size),
    }

    encoded, decoded = model_autoencoder_forward(x, params)
    encoded = jax.block_until_ready(encoded)
    decoded = jax.block_until_ready(decoded)

    assert encoded.shape == (batch, bottleneck_size)
    assert decoded.shape == (batch, input_size)

    # bf16-consistent reference (same precision model as the kernel).
    enc_bf, dec_bf = _reference_forward_bf16(x, params)
    assert jnp.allclose(encoded, enc_bf, atol=1e-2, rtol=1e-2)
    assert jnp.allclose(decoded, dec_bf, atol=1e-2, rtol=1e-2)

    # Loose sanity check against the full-f32 reference (bf16 weight quantization).
    enc_f32, dec_f32 = _reference_forward_f32(x, params)
    assert jnp.allclose(encoded, enc_f32, atol=5e-2, rtol=5e-2)
    assert jnp.allclose(decoded, dec_f32, atol=5e-2, rtol=5e-2)

    print("KERNEL_OK")
</pallas_src>

<mosaic_0001>
module attributes {stable_mosaic.version = 11 : i64} {
  func.func @_autoencoder_kernel(%arg0: i32, %arg1: memref<128x32xbf16, #tpu.memory_space<vmem>>, %arg2: memref<5x128x128xbf16, #tpu.memory_space<vmem>>, %arg3: memref<8x128xf32, #tpu.memory_space<vmem>>, %arg4: memref<128x128xf32, #tpu.memory_space<vmem>>) attributes {dimension_semantics = [#tpu.dimension_semantics<parallel>], iteration_bounds = array<i64: 4>, scalar_prefetch = 0 : i64, scratch_operands = 0 : i64, tpu.core_type = #tpu.core_type<tc>, window_params = [{transform_indices = @transform_0, window_bounds = array<i64: 128, 32>}, {pipeline_mode = #tpu.pipeline_mode<synchronous>, transform_indices = @transform_1, window_bounds = array<i64: 5, 128, 128>}, {pipeline_mode = #tpu.pipeline_mode<synchronous>, transform_indices = @transform_2, window_bounds = array<i64: 8, 128>}, {transform_indices = @transform_3, window_bounds = array<i64: 128, 128>}]} {
    %c0 = arith.constant 0 : index
    %c0_0 = arith.constant 0 : index
    %0 = vector.load %arg1[%c0, %c0_0] : memref<128x32xbf16, #tpu.memory_space<vmem>>, vector<128x32xbf16>
    %c0_1 = arith.constant 0 : index
    %c0_2 = arith.constant 0 : index
    %c0_3 = arith.constant 0 : index
    %1 = vector.load %arg2[%c0_1, %c0_2, %c0_3] : memref<5x128x128xbf16, #tpu.memory_space<vmem>>, vector<1x32x128xbf16>
    %2 = vector.shape_cast %1 : vector<1x32x128xbf16> to vector<32x128xbf16>
    %cst = arith.constant dense<0.000000e+00> : vector<128x128xf32>
    %3 = tpu.matmul %0, %2, %cst {dimension_numbers = #tpu.dot_dimension_numbers<[1], [0], [0], [1], [0, 0, 1, 1], [], []>} : vector<128x32xbf16>, vector<32x128xbf16>, vector<128x128xf32> -> vector<128x128xf32>
    %c0_4 = arith.constant 0 : index
    %c0_5 = arith.constant 0 : index
    %4 = vector.load %arg3[%c0_4, %c0_5] : memref<8x128xf32, #tpu.memory_space<vmem>>, vector<1x128xf32>
    %5 = vector.broadcast %4 : vector<1x128xf32> to vector<128x128xf32>
    %6 = arith.addf %3, %5 : vector<128x128xf32>
    %cst_6 = arith.constant 0.000000e+00 : f32
    %7 = vector.broadcast %cst_6 : f32 to vector<128x128xf32>
    %8 = arith.maximumf %6, %7 : vector<128x128xf32>
    %9 = arith.truncf %8 : vector<128x128xf32> to vector<128x128xbf16>
    %c1 = arith.constant 1 : index
    %c0_7 = arith.constant 0 : index
    %c0_8 = arith.constant 0 : index
    %10 = vector.load %arg2[%c1, %c0_7, %c0_8] : memref<5x128x128xbf16, #tpu.memory_space<vmem>>, vector<1x128x128xbf16>
    %11 = vector.shape_cast %10 : vector<1x128x128xbf16> to vector<128x128xbf16>
    %cst_9 = arith.constant dense<0.000000e+00> : vector<128x128xf32>
    %12 = tpu.matmul %9, %11, %cst_9 {dimension_numbers = #tpu.dot_dimension_numbers<[1], [0], [0], [1], [0, 0, 1, 1], [], []>} : vector<128x128xbf16>, vector<128x128xbf16>, vector<128x128xf32> -> vector<128x128xf32>
    %c1_10 = arith.constant 1 : index
    %c0_11 = arith.constant 0 : index
    %13 = vector.load %arg3[%c1_10, %c0_11] : memref<8x128xf32, #tpu.memory_space<vmem>>, vector<1x128xf32>
    %14 = vector.broadcast %13 : vector<1x128xf32> to vector<128x128xf32>
    %15 = arith.addf %12, %14 : vector<128x128xf32>
    %cst_12 = arith.constant 0.000000e+00 : f32
    %16 = vector.broadcast %cst_12 : f32 to vector<128x128xf32>
    %17 = arith.maximumf %15, %16 : vector<128x128xf32>
    %18 = arith.truncf %17 : vector<128x128xf32> to vector<128x128xbf16>
    %c2 = arith.constant 2 : index
    %c0_13 = arith.constant 0 : index
    %c0_14 = arith.constant 0 : index
    %19 = vector.load %arg2[%c2, %c0_13, %c0_14] : memref<5x128x128xbf16, #tpu.memory_space<vmem>>, vector<1x128x128xbf16>
    %20 = vector.shape_cast %19 : vector<1x128x128xbf16> to vector<128x128xbf16>
    %cst_15 = arith.constant dense<0.000000e+00> : vector<128x128xf32>
    %21 = tpu.matmul %18, %20, %cst_15 {dimension_numbers = #tpu.dot_dimension_numbers<[1], [0], [0], [1], [0, 0, 1, 1], [], []>} : vector<128x128xbf16>, vector<128x128xbf16>, vector<128x128xf32> -> vector<128x128xf32>
    %c2_16 = arith.constant 2 : index
    %c0_17 = arith.constant 0 : index
    %22 = vector.load %arg3[%c2_16, %c0_17] : memref<8x128xf32, #tpu.memory_space<vmem>>, vector<1x128xf32>
    %23 = vector.broadcast %22 : vector<1x128xf32> to vector<128x128xf32>
    %24 = arith.addf %21, %23 : vector<128x128xf32>
    %25 = arith.truncf %24 : vector<128x128xf32> to vector<128x128xbf16>
    %c3 = arith.constant 3 : index
    %c0_18 = arith.constant 0 : index
    %c0_19 = arith.constant 0 : index
    %26 = vector.load %arg2[%c3, %c0_18, %c0_19] : memref<5x128x128xbf16, #tpu.memory_space<vmem>>, vector<1x128x128xbf16>
    %27 = vector.shape_cast %26 : vector<1x128x128xbf16> to vector<128x128xbf16>
    %cst_20 = arith.constant dense<0.000000e+00> : vector<128x128xf32>
    %28 = tpu.matmul %25, %27, %cst_20 {dimension_numbers = #tpu.dot_dimension_numbers<[1], [0], [0], [1], [0, 0, 1, 1], [], []>} : vector<128x128xbf16>, vector<128x128xbf16>, vector<128x128xf32> -> vector<128x128xf32>
    %c3_21 = arith.constant 3 : index
    %c0_22 = arith.constant 0 : index
    %29 = vector.load %arg3[%c3_21, %c0_22] : memref<8x128xf32, #tpu.memory_space<vmem>>, vector<1x128xf32>
    %30 = vector.broadcast %29 : vector<1x128xf32> to vector<128x128xf32>
    %31 = arith.addf %28, %30 : vector<128x128xf32>
    %cst_23 = arith.constant 0.000000e+00 : f32
    %32 = vector.broadcast %cst_23 : f32 to vector<128x128xf32>
    %33 = arith.maximumf %31, %32 : vector<128x128xf32>
    %34 = arith.truncf %33 : vector<128x128xf32> to vector<128x128xbf16>
    %c4 = arith.constant 4 : index
    %c0_24 = arith.constant 0 : index
    %c0_25 = arith.constant 0 : index
    %35 = vector.load %arg2[%c4, %c0_24, %c0_25] : memref<5x128x128xbf16, #tpu.memory_space<vmem>>, vector<1x128x128xbf16>
    %36 = vector.shape_cast %35 : vector<1x128x128xbf16> to vector<128x128xbf16>
    %cst_26 = arith.constant dense<0.000000e+00> : vector<128x128xf32>
    %37 = tpu.matmul %34, %36, %cst_26 {dimension_numbers = #tpu.dot_dimension_numbers<[1], [0], [0], [1], [0, 0, 1, 1], [], []>} : vector<128x128xbf16>, vector<128x128xbf16>, vector<128x128xf32> -> vector<128x128xf32>
    %c4_27 = arith.constant 4 : index
    %c0_28 = arith.constant 0 : index
    %38 = vector.load %arg3[%c4_27, %c0_28] : memref<8x128xf32, #tpu.memory_space<vmem>>, vector<1x128xf32>
    %39 = vector.broadcast %38 : vector<1x128xf32> to vector<128x128xf32>
    %40 = arith.addf %37, %39 : vector<128x128xf32>
    %41 = arith.addf %40, %24 : vector<128x128xf32>
    %c0_29 = arith.constant 0 : index
    %c0_30 = arith.constant 0 : index
    %42 = vector.load %arg4[%c0_29, %c0_30] : memref<128x128xf32, #tpu.memory_space<vmem>>, vector<128x128xf32>
    tpu.vector_store %arg4[%c0_29, %c0_30], %41 {strides = array<i32>} : memref<128x128xf32, #tpu.memory_space<vmem>>, vector<128x128xf32>,
    return
  }
  func.func @transform_0(%arg0: i32) -> (i32, i32) {
    %c0_i32 = arith.constant 0 : i32
    %c0_i32_0 = arith.constant 0 : i32
    return %arg0, %c0_i32 : i32, i32
  }
  func.func @transform_1(%arg0: i32) -> (i32, i32, i32) {
    %c0_i32 = arith.constant 0 : i32
    %c0_i32_0 = arith.constant 0 : i32
    %c0_i32_1 = arith.constant 0 : i32
    %c0_i32_2 = arith.constant 0 : i32
    return %c0_i32, %c0_i32_0, %c0_i32_1 : i32, i32, i32
  }
  func.func @transform_2(%arg0: i32) -> (i32, i32) {
    %c0_i32 = arith.constant 0 : i32
    %c0_i32_0 = arith.constant 0 : i32
    %c0_i32_1 = arith.constant 0 : i32
    return %c0_i32, %c0_i32_0 : i32, i32
  }
  func.func @transform_3(%arg0: i32) -> (i32, i32) {
    %c0_i32 = arith.constant 0 : i32
    %c0_i32_0 = arith.constant 0 : i32
    return %arg0, %c0_i32 : i32, i32
  }
}

</mosaic_0001>

<llo_original>
// kernel: _forward.1
$region0: #{_forward.1}
  #allocation0 [shape = 'u32[]', space=smem, size = 0x4, offset = 0x4, fixed_abs, tag = 'smem constant byte address 0x4 - core index']
  #allocation1 [shape = 'u32[144,128]{1,0:T(1,128)}', space=vmem, size = 0x12000, scoped, tag = 'internal scratch']
  %s0 = inlined_call_operand.vmem [shape: bf16[512,32], index: 0, kind: input, shape index: {}]
  %s1 = inlined_call_operand.vmem [shape: bf16[5,128,128], index: 1, kind: input, shape index: {}]
  %s2 = inlined_call_operand.vmem [shape: f32[8,128], index: 2, kind: input, shape index: {}]
  %s3 = inlined_call_operand.vmem [shape: f32[512,128], index: 3, kind: output, shape index: {}]
  %s4 = sld [smem:[#allocation0]]
  $region45: #{_forward.1} parent=0
    _
  %s6 = ssub.s32 1, %s4
  %s7 = scalar_select 0, %s6, %s4
  loop: start=0, step=1, limit=6
  $region2: #{_forward.1} parent=0 // loop_pre_header
    _
  $region3: #{_forward.1} parent=0 // loop_header
    %s9 = sphi 0, %s13
    %p10 = scmp.ge.s32.totalorder %s9, 6
    %s19 = sphi 0, %s21
    %s22 = sphi 0, %s19
    %s23 = sphi 0, %s22
    %s39 = sphi 0, %s23
    %s43 = sphi 0, %s43
    %s45 = sphi 0, %s43
    %s46 = sphi 0, %s45
    %s60 = sphi 0, %s46
    %s64 = sphi 0, %s64
    %s66 = sphi 0, %s64
    %s67 = sphi 0, %s66
    %s81 = sphi 0, %s67
    %s87 = sphi 0, %s89
    %s90 = sphi 0, %s87
    %s91 = sphi 0, %s90
    %s107 = sphi 0, %s91
  $region4: #{_forward.1} parent=0 // loop_header_branch
    %12 = sbr.rel (%p10) target = $region8
  $region5: #{_forward.1} parent=0 // loop_body
    %s14 = ssub.s32 %s9, 1
    %s15 = ssub.s32 %s9, 2
    %s16 = sadd.s32 %s9, 1
    %s17 = ssub.s32 %s9, %s16
    %p18 = scmp.eq.s32.totalorder %s17, 0
    %s20 = sadd.s32 %s19, 1
    %s21 = scalar_select %p18, %s19, %s20
    %p24 = pneg %p18
    %p25 = scmp.eq.s32.totalorder %s9, 3
    %p26 = por %p24, %p25
    %p27 = scmp.ne.s32.totalorder %s19, %s22
    %p28 = scmp.eq.s32.totalorder %s9, 0
    %p29 = por %p27, %p28
    %p30 = scmp.ne.s32.totalorder %s19, %s22
    %p31 = scmp.eq.s32.totalorder %s14, 3
    %p32 = por %p30, %p31
    %p33 = scmp.ne.s32.totalorder %s22, %s23
    %p34 = scmp.eq.s32.totalorder %s14, 0
    %p35 = por %p33, %p34
    %p36 = scmp.ne.s32.totalorder %s22, %s23
    %p37 = scmp.eq.s32.totalorder %s15, 3
    %p38 = por %p36, %p37
    %p40 = scmp.ne.s32.totalorder %s23, %s39
    %p41 = scmp.eq.s32.totalorder %s15, 0
    %p42 = por %p40, %p41
    %s44 = sadd.s32 %s43, 1
    %p47 = scmp.eq.s32.totalorder %s9, 3
    %p48 = scmp.ne.s32.totalorder %s43, %s45
    %p49 = scmp.eq.s32.totalorder %s9, 0
    %p50 = por %p48, %p49
    %p51 = scmp.ne.s32.totalorder %s43, %s45
    %p52 = scmp.eq.s32.totalorder %s14, 3
    %p53 = por %p51, %p52
    %p54 = scmp.ne.s32.totalorder %s45, %s46
    %p55 = scmp.eq.s32.totalorder %s14, 0
    %p56 = por %p54, %p55
    %p57 = scmp.ne.s32.totalorder %s45, %s46
    %p58 = scmp.eq.s32.totalorder %s15, 3
    %p59 = por %p57, %p58
    %p61 = scmp.ne.s32.totalorder %s46, %s60
    %p62 = scmp.eq.s32.totalorder %s15, 0
    %p63 = por %p61, %p62
    %s65 = sadd.s32 %s64, 1
    %p68 = scmp.eq.s32.totalorder %s9, 3
    %p69 = scmp.ne.s32.totalorder %s64, %s66
    %p70 = scmp.eq.s32.totalorder %s9, 0
    %p71 = por %p69, %p70
    %p72 = scmp.ne.s32.totalorder %s64, %s66
    %p73 = scmp.eq.s32.totalorder %s14, 3
    %p74 = por %p72, %p73
    %p75 = scmp.ne.s32.totalorder %s66, %s67
    %p76 = scmp.eq.s32.totalorder %s14, 0
    %p77 = por %p75, %p76
    %p78 = scmp.ne.s32.totalorder %s66, %s67
    %p79 = scmp.eq.s32.totalorder %s15, 3
    %p80 = por %p78, %p79
    %p82 = scmp.ne.s32.totalorder %s67, %s81
    %p83 = scmp.eq.s32.totalorder %s15, 0
    %p84 = por %p82, %p83
    %s85 = ssub.s32 %s9, %s16
    %p86 = scmp.eq.s32.totalorder %s85, 0
    %s88 = sadd.s32 %s87, 1
    %s89 = scalar_select %p86, %s87, %s88
    %p92 = pneg %p86
    %p93 = scmp.eq.s32.totalorder %s9, 3
    %p94 = por %p92, %p93
    %p95 = scmp.ne.s32.totalorder %s87, %s90
    %p96 = scmp.eq.s32.totalorder %s9, 0
    %p97 = por %p95, %p96
    %p98 = scmp.ne.s32.totalorder %s87, %s90
    %p99 = scmp.eq.s32.totalorder %s14, 3
    %p100 = por %p98, %p99
    %p101 = scmp.ne.s32.totalorder %s90, %s91
    %p102 = scmp.eq.s32.totalorder %s14, 0
    %p103 = por %p101, %p102
    %p104 = scmp.ne.s32.totalorder %s90, %s91
    %p105 = scmp.eq.s32.totalorder %s15, 3
    %p106 = por %p104, %p105
    %p108 = scmp.ne.s32.totalorder %s91, %s107
    %p109 = scmp.eq.s32.totalorder %s15, 0
    %p110 = por %p108, %p109
    %p111 = scmp.le.s32.totalorder 1, %s9
    %p112 = scmp.lt.s32.totalorder %s9, 5
    %p113 = pnand %p111, %p112
    %p114 = pneg %p113
    // Predicated region
    $region9: #{_forward.1} parent=5 // pred_check
      _
    $region10: #{_forward.1} parent=5 // pred_check_branch
      %116 = sbr.rel (%p113) target = $region12
    $region11: #{_forward.1} parent=5 // pred_region
      %s117 = ssub.s32 %s9, 1
      // Predicated region
      $region13: #{_forward.1} parent=11 // pred_check
        %p118 = pneg %p56
      $region14: #{_forward.1} parent=11 // pred_check_branch
        %120 = sbr.rel (%p118) target = $region16
      $region15: #{_forward.1} parent=11 // pred_region
        _
      $region16: #{_forward.1} parent=11 // pred_fallthru
        _
      // Predicated region
      $region17: #{_forward.1} parent=11 // pred_check
        %p121 = pneg %p77
      $region18: #{_forward.1} parent=11 // pred_check_branch
        %123 = sbr.rel (%p121) target = $region20
      $region19: #{_forward.1} parent=11 // pred_region
        _
      $region20: #{_forward.1} parent=11 // pred_fallthru
        _
    $region12: #{_forward.1} parent=5 // pred_fallthru
      _
    %p124 = scmp.lt.s32.totalorder %s9, 4
    // Predicated region
    $region21: #{_forward.1} parent=5 // pred_check
      %p125 = pneg %p124
    $region22: #{_forward.1} parent=5 // pred_check_branch
      %127 = sbr.rel (%p125) target = $region24
    $region23: #{_forward.1} parent=5 // pred_region
      // Predicated region
      $region25: #{_forward.1} parent=23 // pred_check
        %p128 = pneg %p29
      $region26: #{_forward.1} parent=23 // pred_check_branch
        %130 = sbr.rel (%p128) target = $region28
      $region27: #{_forward.1} parent=23 // pred_region
        %s131 = smul.u32 16, %s9
        %p132 = scmp.lt.s32.totalorder %s131, 63
        %s133 = scalar_select %p132, %s131, 63
        %s134 = smul.addr %s133, 4
        %s135 = scalar_lea.vmem %s0, %s134
        %s136 = smul.u32 16, %s9
      $region28: #{_forward.1} parent=23 // pred_fallthru
        _
    $region24: #{_forward.1} parent=5 // pred_fallthru
      _
    %p137 = scmp.le.s32.totalorder 1, %s9
    %p138 = scmp.lt.s32.totalorder %s9, 5
    %p139 = pnand %p137, %p138
    %p140 = pneg %p139
    // Predicated region
    $region29: #{_forward.1} parent=5 // pred_check
      _
    $region30: #{_forward.1} parent=5 // pred_check_branch
      %142 = sbr.rel (%p139) target = $region32
    $region31: #{_forward.1} parent=5 // pred_region
      %s143 = ssub.s32 %s9, 1
      %s144 = smul.u32 16, %s14
      %p145 = scmp.lt.s32.totalorder %s144, 63
      %s146 = scalar_select %p145, %s144, 63
      %s147 = smul.addr %s146, 4
      %s148 = scalar_lea.vmem %s0, %s147
      %p149 = pneg %p35
      %p150 = pneg %p32
      %p151 = pneg %p56
      %p152 = pneg %p53
      %p153 = pneg %p77
      %p154 = pneg %p74
      %p155 = pneg %p103
      %p156 = pneg %p100
      %s157 = smul.u32 16, %s14
      %p158 = scmp.lt.s32.totalorder %s157, 63
      %s159 = scalar_select %p158, %s157, 63
      %s160 = smul.addr %s159, 8
      %s161 = scalar_lea.vmem %s3, %s160
      %s162 = smul.u32 16, %s14
      %p163 = scmp.lt.s32.totalorder %s162, 63
      %s164 = scalar_select %p163, %s162, 63
      %s165 = smul.addr %s164, 4
      %s166 = scalar_lea.vmem %s0, %s165
      %s167 = smul.u32 16, %s14
      %s168 = smul.u32 16, %s14
      %p169 = scmp.lt.s32.totalorder %s168, 63
      %s170 = scalar_select %p169, %s168, 63
      %s171 = smul.addr %s170, 8
      %s172 = scalar_lea.vmem %s3, %s171
      %s173 = smul.u32 16, %s14
      %v175 = vld [vmem:[%s166] sm:$0xf]
      %v176 = vld [vmem:[%s166 + $0x4] sm:$0xf]
      %v177 = vld [vmem:[%s166 + $0x8] sm:$0xf]
      %v178 = vld [vmem:[%s166 + $0xc] sm:$0xf]
      %v179 = vld [vmem:[%s166 + $0x10] sm:$0xf]
      %v180 = vld [vmem:[%s166 + $0x14] sm:$0xf]
      %v181 = vld [vmem:[%s166 + $0x18] sm:$0xf]
      %v182 = vld [vmem:[%s166 + $0x1c] sm:$0xf]
      %v183 = vld [vmem:[%s166 + $0x20] sm:$0xf]
      %v184 = vld [vmem:[%s166 + $0x24] sm:$0xf]
      %v185 = vld [vmem:[%s166 + $0x28] sm:$0xf]
      %v186 = vld [vmem:[%s166 + $0x2c] sm:$0xf]
      %v187 = vld [vmem:[%s166 + $0x30] sm:$0xf]
      %v188 = vld [vmem:[%s166 + $0x34] sm:$0xf]
      %v189 = vld [vmem:[%s166 + $0x38] sm:$0xf]
      %v190 = vld [vmem:[%s166 + $0x3c] sm:$0xf]
      %v191 = vld [vmem:[%s1] sm:$0xf]
      %v192 = vld [vmem:[%s1 + $0x4] sm:$0xf]
      %v193 = vld [vmem:[%s1 + $0x8] sm:$0xf]
      %v194 = vld [vmem:[%s1 + $0xc] sm:$0xf]
      %v195 = vld [vmem:[%s2] sm:$0x1]
      %v196 = vlaneseq
      %v197 = vshrl.u32 %v196, 7
      %v198 = vsub.s32 0, %v197
      %v199 = vrot.slane %v195, %v198
      %v216 = vunpack.c.l.b16 %v175
      %v217 = vunpack.c.l.b16 %v176
      %v218 = vunpack.c.l.b16 %v177
      %v219 = vunpack.c.l.b16 %v178
      %v220 = vunpack.c.l.b16 %v179
      %v221 = vunpack.c.l.b16 %v180
      %v222 = vunpack.c.l.b16 %v181
      %v223 = vunpack.c.l.b16 %v182
      %v224 = vunpack.c.l.b16 %v183
      %v225 = vunpack.c.l.b16 %v184
      %v226 = vunpack.c.l.b16 %v185
      %v227 = vunpack.c.l.b16 %v186
      %v228 = vunpack.c.l.b16 %v187
      %v229 = vunpack.c.l.b16 %v188
      %v230 = vunpack.c.l.b16 %v189
      %v231 = vunpack.c.l.b16 %v190
      %v232 = vpack.c.b16 %v217, %v216
      %v233 = vpack.c.b16 %v219, %v218
      %v234 = vpack.c.b16 %v221, %v220
      %v235 = vpack.c.b16 %v223, %v222
      %v236 = vpack.c.b16 %v225, %v224
      %v237 = vpack.c.b16 %v227, %v226
      %v238 = vpack.c.b16 %v229, %v228
      %v239 = vpack.c.b16 %v231, %v230
      %v244 = vunpack.c.l.b16 %v191
      %v245 = vunpack.c.l.b16 %v192
      %v246 = vunpack.c.l.b16 %v193
      %v247 = vunpack.c.l.b16 %v194
      %v248 = vpack.c.b16 %v245, %v244
      %v249 = vpack.c.b16 %v247, %v246
      %vm252 = vcmask 261120
      %v254 = vsel %vm252, %v232, 0
      %v257 = vsel %vm252, %v233, 0
      %v260 = vsel %vm252, %v234, 0
      %v263 = vsel %vm252, %v235, 0
      %v266 = vsel %vm252, %v236, 0
      %v269 = vsel %vm252, %v237, 0
      %v272 = vsel %vm252, %v238, 0
      %v275 = vsel %vm252, %v239, 0
      %277 = vmatprep.subr.bf16.mxu0 0
      %278 = vmatpush1.bf16.msra.mxu0 %v248
      %279 = vmatprep.subr.bf16.mxu0 0
      %280 = vmatpush1.bf16.msra.mxu0 %v249
      %281 = vmatprep.subr.bf16.mxu0 0
      %282 = vmatpush1.bf16.msra.mxu0 0
      %283 = vmatprep.subr.bf16.mxu0 0
      %284 = vmatpush1.bf16.msra.mxu0 0
      %285 = vmatprep.subr.bf16.mxu0 0
      %286 = vmatpush1.bf16.msra.mxu0 0
      %287 = vmatprep.subr.bf16.mxu0 0
      %288 = vmatpush1.bf16.msra.mxu0 0
      %289 = vmatprep.subr.bf16.mxu0 0
      %290 = vmatpush1.bf16.msra.mxu0 0
      %291 = vmatprep.subr.bf16.mxu0 0
      %292 = vmatpush1.bf16.msra.mxu0 0
      %293 = vmatprep.subr.bf16.mxu0 0
      %294 = vmatpush1.bf16.msra.mxu0 0
      %295 = vmatprep.subr.bf16.mxu0 0
      %296 = vmatpush1.bf16.msra.mxu0 0
      %297 = vmatprep.subr.bf16.mxu0 0
      %298 = vmatpush1.bf16.msra.mxu0 0
      %299 = vmatprep.subr.bf16.mxu0 0
      %300 = vmatpush1.bf16.msra.mxu0 0
      %301 = vmatprep.subr.bf16.mxu0 0
      %302 = vmatpush1.bf16.msra.mxu0 0
      %303 = vmatprep.subr.bf16.mxu0 0
      %304 = vmatpush1.bf16.msra.mxu0 0
      %305 = vmatprep.subr.bf16.mxu0 0
      %306 = vmatpush1.bf16.msra.mxu0 0
      %307 = vmatprep.subr.bf16.mxu0 0
      %308 = vmatpush1.bf16.msra.mxu0 0
      %309 = vmatprep.mubr.bf16.mxu0 0
      %310 = vmatmul.mubr.bf16.gmra.mrb[0].mxu0 %v254
      %v311 = vpop.f32.mrb[0].mxu0
      %v312 = vadd.f32 %v199, %v311
      %v313 = vpop.f32.mrb[0].mxu0
      %v314 = vpop.f32.mrb[0].mxu0
      %v315 = vadd.f32 %v199, %v314
      %v316 = vpop.f32.mrb[0].mxu0
      %317 = vmatprep.mubr.bf16.mxu0 0
      %318 = vmatmul.mubr.bf16.gmra.mrb[0].mxu0 %v257
      %v319 = vpop.f32.mrb[0].mxu0
      %v320 = vadd.f32 %v199, %v319
      %v321 = vpop.f32.mrb[0].mxu0
      %v322 = vpop.f32.mrb[0].mxu0
      %v323 = vadd.f32 %v199, %v322
      %v324 = vpop.f32.mrb[0].mxu0
      %325 = vmatprep.mubr.bf16.mxu0 0
      %326 = vmatmul.mubr.bf16.gmra.mrb[0].mxu0 %v260
      %v327 = vpop.f32.mrb[0].mxu0
      %v328 = vadd.f32 %v199, %v327
      %v329 = vpop.f32.mrb[0].mxu0
      %v330 = vpop.f32.mrb[0].mxu0
      %v331 = vadd.f32 %v199, %v330
      %v332 = vpop.f32.mrb[0].mxu0
      %333 = vmatprep.mubr.bf16.mxu0 0
      %334 = vmatmul.mubr.bf16.gmra.mrb[0].mxu0 %v263
      %v335 = vpop.f32.mrb[0].mxu0
      %v336 = vadd.f32 %v199, %v335
      %v337 = vpop.f32.mrb[0].mxu0
      %v338 = vpop.f32.mrb[0].mxu0
      %v339 = vadd.f32 %v199, %v338
      %v340 = vpop.f32.mrb[0].mxu0
      %341 = vmatprep.mubr.bf16.mxu0 0
      %342 = vmatmul.mubr.bf16.gmra.mrb[0].mxu0 %v266
      %v343 = vpop.f32.mrb[0].mxu0
      %v344 = vadd.f32 %v199, %v343
      %v345 = vpop.f32.mrb[0].mxu0
      %v346 = vpop.f32.mrb[0].mxu0
      %v347 = vadd.f32 %v199, %v346
      %v348 = vpop.f32.mrb[0].mxu0
      %349 = vmatprep.mubr.bf16.mxu0 0
      %350 = vmatmul.mubr.bf16.gmra.mrb[0].mxu0 %v269
      %v351 = vpop.f32.mrb[0].mxu0
      %v352 = vadd.f32 %v199, %v351
      %v353 = vpop.f32.mrb[0].mxu0
      %v354 = vpop.f32.mrb[0].mxu0
      %v355 = vadd.f32 %v199, %v354
      %v356 = vpop.f32.mrb[0].mxu0
      %357 = vmatprep.mubr.bf16.mxu0 0
      %358 = vmatmul.mubr.bf16.gmra.mrb[0].mxu0 %v272
      %v359 = vpop.f32.mrb[0].mxu0
      %v360 = vadd.f32 %v199, %v359
      %v361 = vpop.f32.mrb[0].mxu0
      %v362 = vpop.f32.mrb[0].mxu0
      %v363 = vadd.f32 %v199, %v362
      %v364 = vpop.f32.mrb[0].mxu0
      %365 = vmatprep.mubr.bf16.mxu0 0
      %366 = vmatmul.mubr.bf16.gmra.mrb[0].mxu0 %v275
      %v367 = vpop.f32.mrb[0].mxu0
      %v368 = vadd.f32 %v199, %v367
      %v369 = vpop.f32.mrb[0].mxu0
      %v370 = vpop.f32.mrb[0].mxu0
      %v371 = vadd.f32 %v199, %v370
      %v372 = vpop.f32.mrb[0].mxu0
      %373 = vdwg.mxu0
      %v374 = vmax.f32 %v312, 0.0
      %v375 = vmax.f32 %v315, 0.0
      %v376 = vmax.f32 %v320, 0.0
      %v377 = vmax.f32 %v323, 0.0
      %v378 = vmax.f32 %v328, 0.0
      %v379 = vmax.f32 %v331, 0.0
      %v380 = vmax.f32 %v336, 0.0
      %v381 = vmax.f32 %v339, 0.0
      %v382 = vmax.f32 %v344, 0.0
      %v383 = vmax.f32 %v347, 0.0
      %v384 = vmax.f32 %v352, 0.0
      %v385 = vmax.f32 %v355, 0.0
      %v386 = vmax.f32 %v360, 0.0
      %v387 = vmax.f32 %v363, 0.0
      %v388 = vmax.f32 %v368, 0.0
      %v389 = vmax.f32 %v371, 0.0
      %v390 = vpack.c.bf16 %v375, %v374
      %v391 = vpack.c.bf16 %v377, %v376
      %v392 = vpack.c.bf16 %v379, %v378
      %v393 = vpack.c.bf16 %v381, %v380
      %v394 = vpack.c.bf16 %v383, %v382
      %v395 = vpack.c.bf16 %v385, %v384
      %v396 = vpack.c.bf16 %v387, %v386
      %v397 = vpack.c.bf16 %v389, %v388
      %s398 = scalar_lea.vmem %s1, 64
      %v399 = vld [vmem:[%s398] sm:$0xf]
      %v400 = vld [vmem:[%s398 + $0x4] sm:$0xf]
      %v401 = vld [vmem:[%s398 + $0x8] sm:$0xf]
      %v402 = vld [vmem:[%s398 + $0xc] sm:$0xf]
      %v403 = vld [vmem:[%s398 + $0x10] sm:$0xf]
      %v404 = vld [vmem:[%s398 + $0x14] sm:$0xf]
      %v405 = vld [vmem:[%s398 + $0x18] sm:$0xf]
      %v406 = vld [vmem:[%s398 + $0x1c] sm:$0xf]
      %v407 = vld [vmem:[%s398 + $0x20] sm:$0xf]
      %v408 = vld [vmem:[%s398 + $0x24] sm:$0xf]
      %v409 = vld [vmem:[%s398 + $0x28] sm:$0xf]
      %v410 = vld [vmem:[%s398 + $0x2c] sm:$0xf]
      %v411 = vld [vmem:[%s398 + $0x30] sm:$0xf]
      %v412 = vld [vmem:[%s398 + $0x34] sm:$0xf]
      %v413 = vld [vmem:[%s398 + $0x38] sm:$0xf]
      %v414 = vld [vmem:[%s398 + $0x3c] sm:$0xf]
      %v415 = vld [vmem:[%s2 + $0x1] sm:$0x1]
      %v416 = vlaneseq
      %v417 = vshrl.u32 %v416, 7
      %v418 = vsub.s32 0, %v417
      %v419 = vrot.slane %v415, %v418
      %v436 = vunpack.c.l.b16 %v399
      %v437 = vunpack.c.l.b16 %v400
      %v438 = vunpack.c.l.b16 %v401
      %v439 = vunpack.c.l.b16 %v402
      %v440 = vunpack.c.l.b16 %v403
      %v441 = vunpack.c.l.b16 %v404
      %v442 = vunpack.c.l.b16 %v405
      %v443 = vunpack.c.l.b16 %v406
      %v444 = vunpack.c.l.b16 %v407
      %v445 = vunpack.c.l.b16 %v408
      %v446 = vunpack.c.l.b16 %v409
      %v447 = vunpack.c.l.b16 %v410
      %v448 = vunpack.c.l.b16 %v411
      %v449 = vunpack.c.l.b16 %v412
      %v450 = vunpack.c.l.b16 %v413
      %v451 = vunpack.c.l.b16 %v414
      %v452 = vpack.c.b16 %v437, %v436
      %v453 = vpack.c.b16 %v439, %v438
      %v454 = vpack.c.b16 %v441, %v440
      %v455 = vpack.c.b16 %v443, %v442
      %v456 = vpack.c.b16 %v445, %v444
      %v457 = vpack.c.b16 %v447, %v446
      %v458 = vpack.c.b16 %v449, %v448
      %v459 = vpack.c.b16 %v451, %v450
      %468 = vmatprep.subr.bf16.mxu0 0
      %469 = vmatpush1.bf16.msra.mxu0 %v452
      %470 = vmatprep.subr.bf16.mxu0 0
      %471 = vmatpush1.bf16.msra.mxu0 %v453
      %472 = vmatprep.subr.bf16.mxu0 0
      %473 = vmatpush1.bf16.msra.mxu0 %v454
      %474 = vmatprep.subr.bf16.mxu0 0
      %475 = vmatpush1.bf16.msra.mxu0 %v455
      %476 = vmatprep.subr.bf16.mxu0 0
      %477 = vmatpush1.bf16.msra.mxu0 %v456
      %478 = vmatprep.subr.bf16.mxu0 0
      %479 = vmatpush1.bf16.msra.mxu0 %v457
      %480 = vmatprep.subr.bf16.mxu0 0
      %481 = vmatpush1.bf16.msra.mxu0 %v458
      %482 = vmatprep.subr.bf16.mxu0 0
      %483 = vmatpush1.bf16.msra.mxu0 %v459
      %484 = vmatprep.subr.bf16.mxu0 0
      %485 = vmatpush1.bf16.msra.mxu0 0
      %486 = vmatprep.subr.bf16.mxu0 0
      %487 = vmatpush1.bf16.msra.mxu0 0
      %488 = vmatprep.subr.bf16.mxu0 0
      %489 = vmatpush1.bf16.msra.mxu0 0
      %490 = vmatprep.subr.bf16.mxu0 0
      %491 = vmatpush1.bf16.msra.mxu0 0
      %492 = vmatprep.subr.bf16.mxu0 0
      %493 = vmatpush1.bf16.msra.mxu0 0
      %494 = vmatprep.subr.bf16.mxu0 0
      %495 = vmatpush1.bf16.msra.mxu0 0
      %496 = vmatprep.subr.bf16.mxu0 0
      %497 = vmatpush1.bf16.msra.mxu0 0
      %498 = vmatprep.subr.bf16.mxu0 0
      %499 = vmatpush1.bf16.msra.mxu0 0
      %500 = vmatprep.mubr.bf16.mxu0 0
      %501 = vmatmul.mubr.bf16.gmra.mrb[0].mxu0 %v390
      %v502 = vpop.f32.mrb[0].mxu0
      %v503 = vadd.f32 %v419, %v502
      %v504 = vpop.f32.mrb[0].mxu0
      %v505 = vpop.f32.mrb[0].mxu0
      %v506 = vadd.f32 %v419, %v505
      %v507 = vpop.f32.mrb[0].mxu0
      %508 = vmatprep.mubr.bf16.mxu0 0
      %509 = vmatmul.mubr.bf16.gmra.mrb[0].mxu0 %v391
      %v510 = vpop.f32.mrb[0].mxu0
      %v511 = vadd.f32 %v419, %v510
      %v512 = vpop.f32.mrb[0].mxu0
      %v513 = vpop.f32.mrb[0].mxu0
      %v514 = vadd.f32 %v419, %v513
      %v515 = vpop.f32.mrb[0].mxu0
      %516 = vmatprep.mubr.bf16.mxu0 0
      %517 = vmatmul.mubr.bf16.gmra.mrb[0].mxu0 %v392
      %v518 = vpop.f32.mrb[0].mxu0
      %v519 = vadd.f32 %v419, %v518
      %v520 = vpop.f32.mrb[0].mxu0
      %v521 = vpop.f32.mrb[0].mxu0
      %v522 = vadd.f32 %v419, %v521
      %v523 = vpop.f32.mrb[0].mxu0
      %524 = vmatprep.mubr.bf16.mxu0 0
      %525 = vmatmul.mubr.bf16.gmra.mrb[0].mxu0 %v393
      %v526 = vpop.f32.mrb[0].mxu0
      %v527 = vadd.f32 %v419, %v526
      %v528 = vpop.f32.mrb[0].mxu0
      %v529 = vpop.f32.mrb[0].mxu0
      %v530 = vadd.f32 %v419, %v529
      %v531 = vpop.f32.mrb[0].mxu0
      %532 = vmatprep.mubr.bf16.mxu0 0
      %533 = vmatmul.mubr.bf16.gmra.mrb[0].mxu0 %v394
      %v534 = vpop.f32.mrb[0].mxu0
      %v535 = vadd.f32 %v419, %v534
      %v536 = vpop.f32.mrb[0].mxu0
      %v537 = vpop.f32.mrb[0].mxu0
      %v538 = vadd.f32 %v419, %v537
      %v539 = vpop.f32.mrb[0].mxu0
      %540 = vmatprep.mubr.bf16.mxu0 0
      %541 = vmatmul.mubr.bf16.gmra.mrb[0].mxu0 %v395
      %v542 = vpop.f32.mrb[0].mxu0
      %v543 = vadd.f32 %v419, %v542
      %v544 = vpop.f32.mrb[0].mxu0
      %v545 = vpop.f32.mrb[0].mxu0
      %v546 = vadd.f32 %v419, %v545
      %v547 = vpop.f32.mrb[0].mxu0
      %548 = vmatprep.mubr.bf16.mxu0 0
      %549 = vmatmul.mubr.bf16.gmra.mrb[0].mxu0 %v396
      %v550 = vpop.f32.mrb[0].mxu0
      %v551 = vadd.f32 %v419, %v550
      %v552 = vpop.f32.mrb[0].mxu0
      %v553 = vpop.f32.mrb[0].mxu0
      %v554 = vadd.f32 %v419, %v553
      %v555 = vpop.f32.mrb[0].mxu0
      %556 = vmatprep.mubr.bf16.mxu0 0
      %557 = vmatmul.mubr.bf16.gmra.mrb[0].mxu0 %v397
      %v558 = vpop.f32.mrb[0].mxu0
      %v559 = vadd.f32 %v419, %v558
      %v560 = vpop.f32.mrb[0].mxu0
      %v561 = vpop.f32.mrb[0].mxu0
      %v562 = vadd.f32 %v419, %v561
      %v563 = vpop.f32.mrb[0].mxu0
      %564 = vdwg.mxu0
      %v565 = vmax.f32 %v503, 0.0
      %v566 = vmax.f32 %v506, 0.0
      %v567 = vmax.f32 %v511, 0.0
      %v568 = vmax.f32 %v514, 0.0
      %v569 = vmax.f32 %v519, 0.0
      %v570 = vmax.f32 %v522, 0.0
      %v571 = vmax.f32 %v527, 0.0
      %v572 = vmax.f32 %v530, 0.0
      %v573 = vmax.f32 %v535, 0.0
      %v574 = vmax.f32 %v538, 0.0
      %v575 = vmax.f32 %v543, 0.0
      %v576 = vmax.f32 %v546, 0.0
      %v577 = vmax.f32 %v551, 0.0
      %v578 = vmax.f32 %v554, 0.0
      %v579 = vmax.f32 %v559, 0.0
      %v580 = vmax.f32 %v562, 0.0
      %v581 = vpack.c.bf16 %v566, %v565
      %v582 = vpack.c.bf16 %v568, %v567
      %v583 = vpack.c.bf16 %v570, %v569
      %v584 = vpack.c.bf16 %v572, %v571
      %v585 = vpack.c.bf16 %v574, %v573
      %v586 = vpack.c.bf16 %v576, %v575
      %v587 = vpack.c.bf16 %v578, %v577
      %v588 = vpack.c.bf16 %v580, %v579
      %s589 = scalar_lea.vmem %s1, 128
      %v590 = vld [vmem:[%s589] sm:$0xf]
      %v591 = vld [vmem:[%s589 + $0x4] sm:$0xf]
      %v592 = vld [vmem:[%s589 + $0x8] sm:$0xf]
      %v593 = vld [vmem:[%s589 + $0xc] sm:$0xf]
      %v594 = vld [vmem:[%s589 + $0x10] sm:$0xf]
      %v595 = vld [vmem:[%s589 + $0x14] sm:$0xf]
      %v596 = vld [vmem:[%s589 + $0x18] sm:$0xf]
      %v597 = vld [vmem:[%s589 + $0x1c] sm:$0xf]
      %v598 = vld [vmem:[%s589 + $0x20] sm:$0xf]
      %v599 = vld [vmem:[%s589 + $0x24] sm:$0xf]
      %v600 = vld [vmem:[%s589 + $0x28] sm:$0xf]
      %v601 = vld [vmem:[%s589 + $0x2c] sm:$0xf]
      %v602 = vld [vmem:[%s589 + $0x30] sm:$0xf]
      %v603 = vld [vmem:[%s589 + $0x34] sm:$0xf]
      %v604 = vld [vmem:[%s589 + $0x38] sm:$0xf]
      %v605 = vld [vmem:[%s589 + $0x3c] sm:$0xf]
      %v606 = vld [vmem:[%s2 + $0x2] sm:$0x1]
      %v607 = vlaneseq
      %v608 = vshrl.u32 %v607, 7
      %v609 = vsub.s32 0, %v608
      %v610 = vrot.slane %v606, %v609
      %v627 = vunpack.c.l.b16 %v590
      %v628 = vunpack.c.l.b16 %v591
      %v629 = vunpack.c.l.b16 %v592
      %v630 = vunpack.c.l.b16 %v593
      %v631 = vunpack.c.l.b16 %v594
      %v632 = vunpack.c.l.b16 %v595
      %v633 = vunpack.c.l.b16 %v596
      %v634 = vunpack.c.l.b16 %v597
      %v635 = vunpack.c.l.b16 %v598
      %v636 = vunpack.c.l.b16 %v599
      %v637 = vunpack.c.l.b16 %v600
      %v638 = vunpack.c.l.b16 %v601
      %v639 = vunpack.c.l.b16 %v602
      %v640 = vunpack.c.l.b16 %v603
      %v641 = vunpack.c.l.b16 %v604
      %v642 = vunpack.c.l.b16 %v605
      %v643 = vpack.c.b16 %v628, %v627
      %v644 = vpack.c.b16 %v630, %v629
      %v645 = vpack.c.b16 %v632, %v631
      %v646 = vpack.c.b16 %v634, %v633
      %v647 = vpack.c.b16 %v636, %v635
      %v648 = vpack.c.b16 %v638, %v637
      %v649 = vpack.c.b16 %v640, %v639
      %v650 = vpack.c.b16 %v642, %v641
      %659 = vmatprep.subr.bf16.mxu0 0
      %660 = vmatpush1.bf16.msra.mxu0 %v643
      %661 = vmatprep.subr.bf16.mxu0 0
      %662 = vmatpush1.bf16.msra.mxu0 %v644
      %663 = vmatprep.subr.bf16.mxu0 0
      %664 = vmatpush1.bf16.msra.mxu0 %v645
      %665 = vmatprep.subr.bf16.mxu0 0
      %666 = vmatpush1.bf16.msra.mxu0 %v646
      %667 = vmatprep.subr.bf16.mxu0 0
      %668 = vmatpush1.bf16.msra.mxu0 %v647
      %669 = vmatprep.subr.bf16.mxu0 0
      %670 = vmatpush1.bf16.msra.mxu0 %v648
      %671 = vmatprep.subr.bf16.mxu0 0
      %672 = vmatpush1.bf16.msra.mxu0 %v649
      %673 = vmatprep.subr.bf16.mxu0 0
      %674 = vmatpush1.bf16.msra.mxu0 %v650
      %675 = vmatprep.subr.bf16.mxu0 0
      %676 = vmatpush1.bf16.msra.mxu0 0
      %677 = vmatprep.subr.bf16.mxu0 0
      %678 = vmatpush1.bf16.msra.mxu0 0
      %679 = vmatprep.subr.bf16.mxu0 0
      %680 = vmatpush1.bf16.msra.mxu0 0
      %681 = vmatprep.subr.bf16.mxu0 0
      %682 = vmatpush1.bf16.msra.mxu0 0
      %683 = vmatprep.subr.bf16.mxu0 0
      %684 = vmatpush1.bf16.msra.mxu0 0
      %685 = vmatprep.subr.bf16.mxu0 0
      %686 = vmatpush1.bf16.msra.mxu0 0
      %687 = vmatprep.subr.bf16.mxu0 0
      %688 = vmatpush1.bf16.msra.mxu0 0
      %689 = vmatprep.subr.bf16.mxu0 0
      %690 = vmatpush1.bf16.msra.mxu0 0
      %691 = vmatprep.mubr.bf16.mxu0 0
      %692 = vmatmul.mubr.bf16.gmra.mrb[0].mxu0 %v581
      %v693 = vpop.f32.mrb[0].mxu0
      %v694 = vadd.f32 %v610, %v693
      %v695 = vpop.f32.mrb[0].mxu0
      %v696 = vpop.f32.mrb[0].mxu0
      %v697 = vadd.f32 %v610, %v696
      %v698 = vpop.f32.mrb[0].mxu0
      %699 = vmatprep.mubr.bf16.mxu0 0
      %700 = vmatmul.mubr.bf16.gmra.mrb[0].mxu0 %v582
      %v701 = vpop.f32.mrb[0].mxu0
      %v702 = vadd.f32 %v610, %v701
      %v703 = vpop.f32.mrb[0].mxu0
      %v704 = vpop.f32.mrb[0].mxu0
      %v705 = vadd.f32 %v610, %v704
      %v706 = vpop.f32.mrb[0].mxu0
      %707 = vmatprep.mubr.bf16.mxu0 0
      %708 = vmatmul.mubr.bf16.gmra.mrb[0].mxu0 %v583
      %v709 = vpop.f32.mrb[0].mxu0
      %v710 = vadd.f32 %v610, %v709
      %v711 = vpop.f32.mrb[0].mxu0
      %v712 = vpop.f32.mrb[0].mxu0
      %v713 = vadd.f32 %v610, %v712
      %v714 = vpop.f32.mrb[0].mxu0
      %715 = vmatprep.mubr.bf16.mxu0 0
      %716 = vmatmul.mubr.bf16.gmra.mrb[0].mxu0 %v584
      %v717 = vpop.f32.mrb[0].mxu0
      %v718 = vadd.f32 %v610, %v717
      %v719 = vpop.f32.mrb[0].mxu0
      %v720 = vpop.f32.mrb[0].mxu0
      %v721 = vadd.f32 %v610, %v720
      %v722 = vpop.f32.mrb[0].mxu0
      %723 = vmatprep.mubr.bf16.mxu0 0
      %724 = vmatmul.mubr.bf16.gmra.mrb[0].mxu0 %v585
      %v725 = vpop.f32.mrb[0].mxu0
      %v726 = vadd.f32 %v610, %v725
      %v727 = vpop.f32.mrb[0].mxu0
      %v728 = vpop.f32.mrb[0].mxu0
      %v729 = vadd.f32 %v610, %v728
      %v730 = vpop.f32.mrb[0].mxu0
      %731 = vmatprep.mubr.bf16.mxu0 0
      %732 = vmatmul.mubr.bf16.gmra.mrb[0].mxu0 %v586
      %v733 = vpop.f32.mrb[0].mxu0
      %v734 = vadd.f32 %v610, %v733
      %v735 = vpop.f32.mrb[0].mxu0
      %v736 = vpop.f32.mrb[0].mxu0
      %v737 = vadd.f32 %v610, %v736
      %v738 = vpop.f32.mrb[0].mxu0
      %739 = vmatprep.mubr.bf16.mxu0 0
      %740 = vmatmul.mubr.bf16.gmra.mrb[0].mxu0 %v587
      %v741 = vpop.f32.mrb[0].mxu0
      %v742 = vadd.f32 %v610, %v741
      %v743 = vpop.f32.mrb[0].mxu0
      %v744 = vpop.f32.mrb[0].mxu0
      %v745 = vadd.f32 %v610, %v744
      %v746 = vpop.f32.mrb[0].mxu0
      %747 = vmatprep.mubr.bf16.mxu0 0
      %748 = vmatmul.mubr.bf16.gmra.mrb[0].mxu0 %v588
      %v749 = vpop.f32.mrb[0].mxu0
      %v750 = vadd.f32 %v610, %v749
      %v751 = vpop.f32.mrb[0].mxu0
      %v752 = vpop.f32.mrb[0].mxu0
      %v753 = vadd.f32 %v610, %v752
      %v754 = vpop.f32.mrb[0].mxu0
      %755 = vdwg.mxu0
      %v756 = vpack.c.bf16 %v697, %v694
      %v757 = vpack.c.bf16 %v705, %v702
      %v758 = vpack.c.bf16 %v713, %v710
      %v759 = vpack.c.bf16 %v721, %v718
      %v760 = vpack.c.bf16 %v729, %v726
      %v761 = vpack.c.bf16 %v737, %v734
      %v762 = vpack.c.bf16 %v745, %v742
      %v763 = vpack.c.bf16 %v753, %v750
      %s764 = scalar_lea.vmem %s1, 192
      %v765 = vld [vmem:[%s764] sm:$0xf]
      %v766 = vld [vmem:[%s764 + $0x4] sm:$0xf]
      %v767 = vld [vmem:[%s764 + $0x8] sm:$0xf]
      %v768 = vld [vmem:[%s764 + $0xc] sm:$0xf]
      %v769 = vld [vmem:[%s764 + $0x10] sm:$0xf]
      %v770 = vld [vmem:[%s764 + $0x14] sm:$0xf]
      %v771 = vld [vmem:[%s764 + $0x18] sm:$0xf]
      %v772 = vld [vmem:[%s764 + $0x1c] sm:$0xf]
      %v773 = vld [vmem:[%s764 + $0x20] sm:$0xf]
      %v774 = vld [vmem:[%s764 + $0x24] sm:$0xf]
      %v775 = vld [vmem:[%s764 + $0x28] sm:$0xf]
      %v776 = vld [vmem:[%s764 + $0x2c] sm:$0xf]
      %v777 = vld [vmem:[%s764 + $0x30] sm:$0xf]
      %v778 = vld [vmem:[%s764 + $0x34] sm:$0xf]
      %v779 = vld [vmem:[%s764 + $0x38] sm:$0xf]
      %v780 = vld [vmem:[%s764 + $0x3c] sm:$0xf]
      %v781 = vld [vmem:[%s2 + $0x3] sm:$0x1]
      %v782 = vlaneseq
      %v783 = vshrl.u32 %v782, 7
      %v784 = vsub.s32 0, %v783
      %v785 = vrot.slane %v781, %v784
      %v802 = vunpack.c.l.b16 %v765
      %v803 = vunpack.c.l.b16 %v766
      %v804 = vunpack.c.l.b16 %v767
      %v805 = vunpack.c.l.b16 %v768
      %v806 = vunpack.c.l.b16 %v769
      %v807 = vunpack.c.l.b16 %v770
      %v808 = vunpack.c.l.b16 %v771
      %v809 = vunpack.c.l.b16 %v772
      %v810 = vunpack.c.l.b16 %v773
      %v811 = vunpack.c.l.b16 %v774
      %v812 = vunpack.c.l.b16 %v775
      %v813 = vunpack.c.l.b16 %v776
      %v814 = vunpack.c.l.b16 %v777
      %v815 = vunpack.c.l.b16 %v778
      %v816 = vunpack.c.l.b16 %v779
      %v817 = vunpack.c.l.b16 %v780
      %v818 = vpack.c.b16 %v803, %v802
      %v819 = vpack.c.b16 %v805, %v804
      %v820 = vpack.c.b16 %v807, %v806
      %v821 = vpack.c.b16 %v809, %v808
      %v822 = vpack.c.b16 %v811, %v810
      %v823 = vpack.c.b16 %v813, %v812
      %v824 = vpack.c.b16 %v815, %v814
      %v825 = vpack.c.b16 %v817, %v816
      %834 = vmatprep.subr.bf16.mxu0 0
      %835 = vmatpush1.bf16.msra.mxu0 %v818
      %836 = vmatprep.subr.bf16.mxu0 0
      %837 = vmatpush1.bf16.msra.mxu0 %v819
      %838 = vmatprep.subr.bf16.mxu0 0
      %839 = vmatpush1.bf16.msra.mxu0 %v820
      %840 = vmatprep.subr.bf16.mxu0 0
      %841 = vmatpush1.bf16.msra.mxu0 %v821
      %842 = vmatprep.subr.bf16.mxu0 0
      %843 = vmatpush1.bf16.msra.mxu0 %v822
      %844 = vmatprep.subr.bf16.mxu0 0
      %845 = vmatpush1.bf16.msra.mxu0 %v823
      %846 = vmatprep.subr.bf16.mxu0 0
      %847 = vmatpush1.bf16.msra.mxu0 %v824
      %848 = vmatprep.subr.bf16.mxu0 0
      %849 = vmatpush1.bf16.msra.mxu0 %v825
      %850 = vmatprep.subr.bf16.mxu0 0
      %851 = vmatpush1.bf16.msra.mxu0 0
      %852 = vmatprep.subr.bf16.mxu0 0
      %853 = vmatpush1.bf16.msra.mxu0 0
      %854 = vmatprep.subr.bf16.mxu0 0
      %855 = vmatpush1.bf16.msra.mxu0 0
      %856 = vmatprep.subr.bf16.mxu0 0
      %857 = vmatpush1.bf16.msra.mxu0 0
      %858 = vmatprep.subr.bf16.mxu0 0
      %859 = vmatpush1.bf16.msra.mxu0 0
      %860 = vmatprep.subr.bf16.mxu0 0
      %861 = vmatpush1.bf16.msra.mxu0 0
      %862 = vmatprep.subr.bf16.mxu0 0
      %863 = vmatpush1.bf16.msra.mxu0 0
      %864 = vmatprep.subr.bf16.mxu0 0
      %865 = vmatpush1.bf16.msra.mxu0 0
      %866 = vmatprep.mubr.bf16.mxu0 0
      %867 = vmatmul.mubr.bf16.gmra.mrb[0].mxu0 %v756
      %v868 = vpop.f32.mrb[0].mxu0
      %v869 = vadd.f32 %v785, %v868
      %v870 = vpop.f32.mrb[0].mxu0
      %v871 = vpop.f32.mrb[0].mxu0
      %v872 = vadd.f32 %v785, %v871
      %v873 = vpop.f32.mrb[0].mxu0
      %874 = vmatprep.mubr.bf16.mxu0 0
      %875 = vmatmul.mubr.bf16.gmra.mrb[0].mxu0 %v757
      %v876 = vpop.f32.mrb[0].mxu0
      %v877 = vadd.f32 %v785, %v876
      %v878 = vpop.f32.mrb[0].mxu0
      %v879 = vpop.f32.mrb[0].mxu0
      %v880 = vadd.f32 %v785, %v879
      %v881 = vpop.f32.mrb[0].mxu0
      %882 = vmatprep.mubr.bf16.mxu0 0
      %883 = vmatmul.mubr.bf16.gmra.mrb[0].mxu0 %v758
      %v884 = vpop.f32.mrb[0].mxu0
      %v885 = vadd.f32 %v785, %v884
      %v886 = vpop.f32.mrb[0].mxu0
      %v887 = vpop.f32.mrb[0].mxu0
      %v888 = vadd.f32 %v785, %v887
      %v889 = vpop.f32.mrb[0].mxu0
      %890 = vmatprep.mubr.bf16.mxu0 0
      %891 = vmatmul.mubr.bf16.gmra.mrb[0].mxu0 %v759
      %v892 = vpop.f32.mrb[0].mxu0
      %v893 = vadd.f32 %v785, %v892
      %v894 = vpop.f32.mrb[0].mxu0
      %v895 = vpop.f32.mrb[0].mxu0
      %v896 = vadd.f32 %v785, %v895
      %v897 = vpop.f32.mrb[0].mxu0
      %898 = vmatprep.mubr.bf16.mxu0 0
      %899 = vmatmul.mubr.bf16.gmra.mrb[0].mxu0 %v760
      %v900 = vpop.f32.mrb[0].mxu0
      %v901 = vadd.f32 %v785, %v900
      %v902 = vpop.f32.mrb[0].mxu0
      %v903 = vpop.f32.mrb[0].mxu0
      %v904 = vadd.f32 %v785, %v903
      %v905 = vpop.f32.mrb[0].mxu0
      %906 = vmatprep.mubr.bf16.mxu0 0
      %907 = vmatmul.mubr.bf16.gmra.mrb[0].mxu0 %v761
      %v908 = vpop.f32.mrb[0].mxu0
      %v909 = vadd.f32 %v785, %v908
      %v910 = vpop.f32.mrb[0].mxu0
      %v911 = vpop.f32.mrb[0].mxu0
      %v912 = vadd.f32 %v785, %v911
      %v913 = vpop.f32.mrb[0].mxu0
      %914 = vmatprep.mubr.bf16.mxu0 0
      %915 = vmatmul.mubr.bf16.gmra.mrb[0].mxu0 %v762
      %v916 = vpop.f32.mrb[0].mxu0
      %v917 = vadd.f32 %v785, %v916
      %v918 = vpop.f32.mrb[0].mxu0
      %v919 = vpop.f32.mrb[0].mxu0
      %v920 = vadd.f32 %v785, %v919
      %v921 = vpop.f32.mrb[0].mxu0
      %922 = vmatprep.mubr.bf16.mxu0 0
      %923 = vmatmul.mubr.bf16.gmra.mrb[0].mxu0 %v763
      %v924 = vpop.f32.mrb[0].mxu0
      %v925 = vadd.f32 %v785, %v924
      %v926 = vpop.f32.mrb[0].mxu0
      %v927 = vpop.f32.mrb[0].mxu0
      %v928 = vadd.f32 %v785, %v927
      %v929 = vpop.f32.mrb[0].mxu0
      %930 = vdwg.mxu0
      %v931 = vmax.f32 %v869, 0.0
      %v932 = vmax.f32 %v872, 0.0
      %v933 = vmax.f32 %v877, 0.0
      %v934 = vmax.f32 %v880, 0.0
      %v935 = vmax.f32 %v885, 0.0
      %v936 = vmax.f32 %v888, 0.0
      %v937 = vmax.f32 %v893, 0.0
      %v938 = vmax.f32 %v896, 0.0
      %v939 = vmax.f32 %v901, 0.0
      %v940 = vmax.f32 %v904, 0.0
      %v941 = vmax.f32 %v909, 0.0
      %v942 = vmax.f32 %v912, 0.0
      %v943 = vmax.f32 %v917, 0.0
      %v944 = vmax.f32 %v920, 0.0
      %v945 = vmax.f32 %v925, 0.0
      %v946 = vmax.f32 %v928, 0.0
      %v947 = vpack.c.bf16 %v932, %v931
      %v948 = vpack.c.bf16 %v934, %v933
      %v949 = vpack.c.bf16 %v936, %v935
      %v950 = vpack.c.bf16 %v938, %v937
      %v951 = vpack.c.bf16 %v940, %v939
      %v952 = vpack.c.bf16 %v942, %v941
      %v953 = vpack.c.bf16 %v944, %v943
      %v954 = vpack.c.bf16 %v946, %v945
      %s955 = scalar_lea.vmem %s1, 256
      %v956 = vld [vmem:[%s955] sm:$0xf]
      %v957 = vld [vmem:[%s955 + $0x4] sm:$0xf]
      %v958 = vld [vmem:[%s955 + $0x8] sm:$0xf]
      %v959 = vld [vmem:[%s955 + $0xc] sm:$0xf]
      %v960 = vld [vmem:[%s955 + $0x10] sm:$0xf]
      %v961 = vld [vmem:[%s955 + $0x14] sm:$0xf]
      %v962 = vld [vmem:[%s955 + $0x18] sm:$0xf]
      %v963 = vld [vmem:[%s955 + $0x1c] sm:$0xf]
      %v964 = vld [vmem:[%s955 + $0x20] sm:$0xf]
      %v965 = vld [vmem:[%s955 + $0x24] sm:$0xf]
      %v966 = vld [vmem:[%s955 + $0x28] sm:$0xf]
      %v967 = vld [vmem:[%s955 + $0x2c] sm:$0xf]
      %v968 = vld [vmem:[%s955 + $0x30] sm:$0xf]
      %v969 = vld [vmem:[%s955 + $0x34] sm:$0xf]
      %v970 = vld [vmem:[%s955 + $0x38] sm:$0xf]
      %v971 = vld [vmem:[%s955 + $0x3c] sm:$0xf]
      %v972 = vld [vmem:[%s2 + $0x4] sm:$0x1]
      %v973 = vlaneseq
      %v974 = vshrl.u32 %v973, 7
      %v975 = vsub.s32 0, %v974
      %v976 = vrot.slane %v972, %v975
      %v993 = vunpack.c.l.b16 %v956
      %v994 = vunpack.c.l.b16 %v957
      %v995 = vunpack.c.l.b16 %v958
      %v996 = vunpack.c.l.b16 %v959
      %v997 = vunpack.c.l.b16 %v960
      %v998 = vunpack.c.l.b16 %v961
      %v999 = vunpack.c.l.b16 %v962
      %v1000 = vunpack.c.l.b16 %v963
      %v1001 = vunpack.c.l.b16 %v964
      %v1002 = vunpack.c.l.b16 %v965
      %v1003 = vunpack.c.l.b16 %v966
      %v1004 = vunpack.c.l.b16 %v967
      %v1005 = vunpack.c.l.b16 %v968
      %v1006 = vunpack.c.l.b16 %v969
      %v1007 = vunpack.c.l.b16 %v970
      %v1008 = vunpack.c.l.b16 %v971
      %v1009 = vpack.c.b16 %v994, %v993
      %v1010 = vpack.c.b16 %v996, %v995
      %v1011 = vpack.c.b16 %v998, %v997
      %v1012 = vpack.c.b16 %v1000, %v999
      %v1013 = vpack.c.b16 %v1002, %v1001
      %v1014 = vpack.c.b16 %v1004, %v1003
      %v1015 = vpack.c.b16 %v1006, %v1005
      %v1016 = vpack.c.b16 %v1008, %v1007
      %1025 = vmatprep.subr.bf16.mxu0 0
      %1026 = vmatpush1.bf16.msra.mxu0 %v1009
      %1027 = vmatprep.subr.bf16.mxu0 0
      %1028 = vmatpush1.bf16.msra.mxu0 %v1010
      %1029 = vmatprep.subr.bf16.mxu0 0
      %1030 = vmatpush1.bf16.msra.mxu0 %v1011
      %1031 = vmatprep.subr.bf16.mxu0 0
      %1032 = vmatpush1.bf16.msra.mxu0 %v1012
      %1033 = vmatprep.subr.bf16.mxu0 0
      %1034 = vmatpush1.bf16.msra.mxu0 %v1013
      %1035 = vmatprep.subr.bf16.mxu0 0
      %1036 = vmatpush1.bf16.msra.mxu0 %v1014
      %1037 = vmatprep.subr.bf16.mxu0 0
      %1038 = vmatpush1.bf16.msra.mxu0 %v1015
      %1039 = vmatprep.subr.bf16.mxu0 0
      %1040 = vmatpush1.bf16.msra.mxu0 %v1016
      %1041 = vmatprep.subr.bf16.mxu0 0
      %1042 = vmatpush1.bf16.msra.mxu0 0
      %1043 = vmatprep.subr.bf16.mxu0 0
      %1044 = vmatpush1.bf16.msra.mxu0 0
      %1045 = vmatprep.subr.bf16.mxu0 0
      %1046 = vmatpush1.bf16.msra.mxu0 0
      %1047 = vmatprep.subr.bf16.mxu0 0
      %1048 = vmatpush1.bf16.msra.mxu0 0
      %1049 = vmatprep.subr.bf16.mxu0 0
      %1050 = vmatpush1.bf16.msra.mxu0 0
      %1051 = vmatprep.subr.bf16.mxu0 0
      %1052 = vmatpush1.bf16.msra.mxu0 0
      %1053 = vmatprep.subr.bf16.mxu0 0
      %1054 = vmatpush1.bf16.msra.mxu0 0
      %1055 = vmatprep.subr.bf16.mxu0 0
      %1056 = vmatpush1.bf16.msra.mxu0 0
      %1057 = vmatprep.mubr.bf16.mxu0 0
      %1058 = vmatmul.mubr.bf16.gmra.mrb[0].mxu0 %v947
      %v1059 = vpop.f32.mrb[0].mxu0
      %v1060 = vadd.f32 %v976, %v1059
      %v1061 = vpop.f32.mrb[0].mxu0
      %v1062 = vpop.f32.mrb[0].mxu0
      %v1063 = vadd.f32 %v976, %v1062
      %v1064 = vpop.f32.mrb[0].mxu0
      %1065 = vmatprep.mubr.bf16.mxu0 0
      %1066 = vmatmul.mubr.bf16.gmra.mrb[0].mxu0 %v948
      %v1067 = vpop.f32.mrb[0].mxu0
      %v1068 = vadd.f32 %v976, %v1067
      %v1069 = vpop.f32.mrb[0].mxu0
      %v1070 = vpop.f32.mrb[0].mxu0
      %v1071 = vadd.f32 %v976, %v1070
      %v1072 = vpop.f32.mrb[0].mxu0
      %1073 = vmatprep.mubr.bf16.mxu0 0
      %1074 = vmatmul.mubr.bf16.gmra.mrb[0].mxu0 %v949
      %v1075 = vpop.f32.mrb[0].mxu0
      %v1076 = vadd.f32 %v976, %v1075
      %v1077 = vpop.f32.mrb[0].mxu0
      %v1078 = vpop.f32.mrb[0].mxu0
      %v1079 = vadd.f32 %v976, %v1078
      %v1080 = vpop.f32.mrb[0].mxu0
      %1081 = vmatprep.mubr.bf16.mxu0 0
      %1082 = vmatmul.mubr.bf16.gmra.mrb[0].mxu0 %v950
      %v1083 = vpop.f32.mrb[0].mxu0
      %v1084 = vadd.f32 %v976, %v1083
      %v1085 = vpop.f32.mrb[0].mxu0
      %v1086 = vpop.f32.mrb[0].mxu0
      %v1087 = vadd.f32 %v976, %v1086
      %v1088 = vpop.f32.mrb[0].mxu0
      %1089 = vmatprep.mubr.bf16.mxu0 0
      %1090 = vmatmul.mubr.bf16.gmra.mrb[0].mxu0 %v951
      %v1091 = vpop.f32.mrb[0].mxu0
      %v1092 = vadd.f32 %v976, %v1091
      %v1093 = vpop.f32.mrb[0].mxu0
      %v1094 = vpop.f32.mrb[0].mxu0
      %v1095 = vadd.f32 %v976, %v1094
      %v1096 = vpop.f32.mrb[0].mxu0
      %1097 = vmatprep.mubr.bf16.mxu0 0
      %1098 = vmatmul.mubr.bf16.gmra.mrb[0].mxu0 %v952
      %v1099 = vpop.f32.mrb[0].mxu0
      %v1100 = vadd.f32 %v976, %v1099
      %v1101 = vpop.f32.mrb[0].mxu0
      %v1102 = vpop.f32.mrb[0].mxu0
      %v1103 = vadd.f32 %v976, %v1102
      %v1104 = vpop.f32.mrb[0].mxu0
      %1105 = vmatprep.mubr.bf16.mxu0 0
      %1106 = vmatmul.mubr.bf16.gmra.mrb[0].mxu0 %v953
      %v1107 = vpop.f32.mrb[0].mxu0
      %v1108 = vadd.f32 %v976, %v1107
      %v1109 = vpop.f32.mrb[0].mxu0
      %v1110 = vpop.f32.mrb[0].mxu0
      %v1111 = vadd.f32 %v976, %v1110
      %v1112 = vpop.f32.mrb[0].mxu0
      %1113 = vmatprep.mubr.bf16.mxu0 0
      %1114 = vmatmul.mubr.bf16.gmra.mrb[0].mxu0 %v954
      %v1115 = vpop.f32.mrb[0].mxu0
      %v1116 = vadd.f32 %v976, %v1115
      %v1117 = vpop.f32.mrb[0].mxu0
      %v1118 = vpop.f32.mrb[0].mxu0
      %v1119 = vadd.f32 %v976, %v1118
      %v1120 = vpop.f32.mrb[0].mxu0
      %1121 = vdwg.mxu0
      %v1122 = vadd.f32 %v1060, %v694
      %v1123 = vadd.f32 %v1063, %v697
      %v1124 = vadd.f32 %v1068, %v702
      %v1125 = vadd.f32 %v1071, %v705
      %v1126 = vadd.f32 %v1076, %v710
      %v1127 = vadd.f32 %v1079, %v713
      %v1128 = vadd.f32 %v1084, %v718
      %v1129 = vadd.f32 %v1087, %v721
      %v1130 = vadd.f32 %v1092, %v726
      %v1131 = vadd.f32 %v1095, %v729
      %v1132 = vadd.f32 %v1100, %v734
      %v1133 = vadd.f32 %v1103, %v737
      %v1134 = vadd.f32 %v1108, %v742
      %v1135 = vadd.f32 %v1111, %v745
      %v1136 = vadd.f32 %v1116, %v750
      %v1137 = vadd.f32 %v1119, %v753
      %1138 = vst [vmem:[%s172] sm:$0xff] %v1122
      %1139 = vst [vmem:[%s172 + $0x8] sm:$0xff] %v1123
      %1140 = vst [vmem:[%s172 + $0x10] sm:$0xff] %v1124
      %1141 = vst [vmem:[%s172 + $0x18] sm:$0xff] %v1125
      %1142 = vst [vmem:[%s172 + $0x20] sm:$0xff] %v1126
      %1143 = vst [vmem:[%s172 + $0x28] sm:$0xff] %v1127
      %1144 = vst [vmem:[%s172 + $0x30] sm:$0xff] %v1128
      %1145 = vst [vmem:[%s172 + $0x38] sm:$0xff] %v1129
      %1146 = vst [vmem:[%s172 + $0x40] sm:$0xff] %v1130
      %1147 = vst [vmem:[%s172 + $0x48] sm:$0xff] %v1131
      %1148 = vst [vmem:[%s172 + $0x50] sm:$0xff] %v1132
      %1149 = vst [vmem:[%s172 + $0x58] sm:$0xff] %v1133
      %1150 = vst [vmem:[%s172 + $0x60] sm:$0xff] %v1134
      %1151 = vst [vmem:[%s172 + $0x68] sm:$0xff] %v1135
      %1152 = vst [vmem:[%s172 + $0x70] sm:$0xff] %v1136
      %1153 = vst [vmem:[%s172 + $0x78] sm:$0xff] %v1137
      %s1154 = smul.u32 16, %s14
      %p1155 = scmp.lt.s32.totalorder %s1154, 63
      %s1156 = scalar_select %p1155, %s1154, 63
      %s1157 = smul.addr %s1156, 8
      %s1158 = scalar_lea.vmem %s3, %s1157
      // Predicated region
      $region33: #{_forward.1} parent=31 // pred_check
        %p1159 = pneg %p100
      $region34: #{_forward.1} parent=31 // pred_check_branch
        %1161 = sbr.rel (%p1159) target = $region36
      $region35: #{_forward.1} parent=31 // pred_region
        %s1162 = smul.u32 16, %s14
      $region36: #{_forward.1} parent=31 // pred_fallthru
        _
    $region32: #{_forward.1} parent=5 // pred_fallthru
      _
    %p1163 = scmp.le.s32.totalorder 2, %s9
    // Predicated region
    $region37: #{_forward.1} parent=5 // pred_check
      %p1164 = pneg %p1163
    $region38: #{_forward.1} parent=5 // pred_check_branch
      %1166 = sbr.rel (%p1164) target = $region40
    $region39: #{_forward.1} parent=5 // pred_region
      %s1167 = ssub.s32 %s9, 2
      // Predicated region
      $region41: #{_forward.1} parent=39 // pred_check
        %p1168 = pneg %p106
      $region42: #{_forward.1} parent=39 // pred_check_branch
        %1170 = sbr.rel (%p1168) target = $region44
      $region43: #{_forward.1} parent=39 // pred_region
        %s1171 = smul.u32 16, %s15
        %p1172 = scmp.lt.s32.totalorder %s1171, 63
        %s1173 = scalar_select %p1172, %s1171, 63
        %s1174 = smul.addr %s1173, 8
        %s1175 = scalar_lea.vmem %s3, %s1174
      $region44: #{_forward.1} parent=39 // pred_fallthru
        _
    $region40: #{_forward.1} parent=5 // pred_fallthru
      _
  $region6: #{_forward.1} parent=0 // loop_footer
    %s13 = sadd.s32 1, %s9
  $region7: #{_forward.1} parent=0 // loop_footer_branch
    %8 = sbr.rel target = $region3
  $region8: #{_forward.1} parent=0 // loop_exit
    _

</llo_original>
